<compile_context>
chip_gen: v6e
topology: v6e:2x2x1
jax: 0.10.0
libtpu: 0.0.40
codegen_flags: <defaults>
</compile_context>

<pallas_src>
import functools

import jax
import jax.numpy as jnp
import numpy as np
from jax.experimental import pallas as pl
from jax.experimental.pallas import tpu as pltpu


def _padding_for(kernel):
    return {3: 1, 5: 2, 7: 3, 9: 4}.get(kernel, 0)


def _pad_channels_to_lane(c, W, lane=128):
    """Smallest c' >= c such that W*c' is a multiple of `lane` (searched up to
    +lane); falls back to c if none exists (kernel still works, just with
    masked partial-lane accesses)."""
    for cp in range(c, c + lane + 1):
        if (W * cp) % lane == 0:
            return cp
    return c


def _band_weights_folded(wt, W, P):
    """Fold kw taps + width zero-padding of a KxK 'same' conv into ONE banded
    matmul weight with the kh taps stacked along the contraction dim.

    wt: (K, K, Cin, Cout) in HWIO.  Returns (K*W*Cin, W*Cout) with
        M[kh*W*Cin + wi*Cin + ci, wo*Cout + co]
            = wt[kh, wi-wo+P, ci, co]  if 0 <= wi-wo+P < K else 0.
    """
    K, _, Cin, Cout = wt.shape
    wi = jnp.arange(W)[:, None]                        # (W, 1)
    wo = jnp.arange(W)[None, :]                        # (1, W)
    kw = wi - wo + P                                   # (W, W)
    valid = (kw >= 0) & (kw < K)
    kw_safe = jnp.clip(kw, 0, K - 1)
    m = wt[:, kw_safe]                                 # (K, W, W, Cin, Cout)
    m = jnp.where(valid[None, :, :, None, None], m, 0.0)
    m = jnp.transpose(m, (0, 1, 3, 2, 4))              # (K, W, Cin, W, Cout)
    return m.reshape(K * W * Cin, W * Cout).astype(jnp.float32)


def _resblock_kernel(x_ref, m1_ref, m2_ref, md_ref, o_ref, *, K, P, H, rows):
    """x_ref  : (rows, Lin)      lane-dense activations, rows = N*H
       m*_ref : (K*Lin, L*)      folded banded conv weights
       o_ref  : (rows, Lout)     stride-1 ds-conv output (lane dense)."""
    x = x_ref[...]                                     # (rows, Lin) f32
    lin = x.shape[-1]

    # Row-within-image ids; pltpu.roll wraps around, so taps that would read
    # across an image (or whole-array) boundary are masked to zero.  Masks are
    # built once and reused by all three convs.
    rid = jax.lax.broadcasted_iota(jnp.int32, (rows, lin), 0) % H
    valid = {}
    for kh in range(K):
        d = kh - P
        if d != 0:
            valid[d] = (rid + d >= 0) & (rid + d < H)

    def conv(a, m_ref):
        # Build the (rows, K*Lin) LHS from masked XLU sublane rolls, then a
        # single MXU contraction against the folded banded weights.
        taps = []
        for kh in range(K):
            d = kh - P
            if d == 0:
                taps.append(a)
            else:
                rolled = pltpu.roll(a, shift=(-d) % rows, axis=0)
                taps.append(jnp.where(valid[d], rolled, 0.0))
        lhs = jnp.concatenate(taps, axis=1)            # (rows, K*Lin)
        return jnp.dot(lhs, m_ref[...], preferred_element_type=jnp.float32)

    # ---- conv1 (k x k, stride 1, pad P, no bias) + ReLU ----
    out1 = jnp.maximum(conv(x, m1_ref), 0.0)
    # ---- conv2 (k x k, stride 1, pad P, no bias) ----
    out2 = conv(out1, m2_ref)
    # ---- residual add ----
    res = out2 + x
    # ---- ds conv (stride 1 here; wrapper subsamples for stride > 1) ----
    o_ref[...] = conv(res, md_ref).astype(o_ref.dtype)


def resblock_ch_forward(x_nchw, w1, w2, wd, *, kernel, stride):
    """x_nchw: (N, Cin, H, W); weights in HWIO. Returns (N, Cout, Ho, Wo)."""
    P = _padding_for(kernel)
    K = kernel
    x = jnp.transpose(x_nchw, (0, 2, 3, 1)).astype(jnp.float32)   # NHWC
    N, H, W, Cin = x.shape
    Cout = wd.shape[-1]
    # The residual add requires 'same' spatial output from conv1/conv2.
    assert H + 2 * P - K + 1 == H and W + 2 * P - K + 1 == W, (
        "ResBlock_CH residual needs 2*padding == kernel - 1")

    # Zero-pad channels so the lane dim is a multiple of 128 (unmasked vld/vst).
    Cin_p = _pad_channels_to_lane(Cin, W)
    Cout_p = _pad_channels_to_lane(Cout, W)
    Lin, Lout = W * Cin_p, W * Cout_p
    rows = N * H

    xp = jnp.pad(x, ((0, 0), (0, 0), (0, 0), (0, Cin_p - Cin)))
    xp = xp.reshape(rows, Lin)

    def pad_w(w, co_to):
        _, _, ci, co = w.shape
        return jnp.pad(w.astype(jnp.float32),
                       ((0, 0), (0, 0), (0, Cin_p - ci), (0, co_to - co)))

    # Folded banded matmul weights (wrapper glue; precomputed in a real model).
    m1 = _band_weights_folded(pad_w(w1, Cin_p), W, P)    # (K*Lin, Lin)
    m2 = _band_weights_folded(pad_w(w2, Cin_p), W, P)    # (K*Lin, Lin)
    md = _band_weights_folded(pad_w(wd, Cout_p), W, P)   # (K*Lin, Lout)

    kfn = functools.partial(_resblock_kernel, K=K, P=P, H=H, rows=rows)

    out_flat = pl.pallas_call(
        kfn,
        out_shape=jax.ShapeDtypeStruct((rows, Lout), jnp.float32),
        grid_spec=pltpu.PrefetchScalarGridSpec(
            num_scalar_prefetch=0,
            # Whole batch in one grid step: per-step overhead (~0.35us) would
            # dominate the tiny per-image work.  (For large N on v7x, split a
            # leading "parallel" batch axis across the two TensorCores.)
            grid=(1,),
            in_specs=[
                pl.BlockSpec((rows, Lin), lambda i: (0, 0)),
                pl.BlockSpec((K * Lin, Lin), lambda i: (0, 0)),
                pl.BlockSpec((K * Lin, Lin), lambda i: (0, 0)),
                pl.BlockSpec((K * Lin, Lout), lambda i: (0, 0)),
            ],
            out_specs=pl.BlockSpec((rows, Lout), lambda i: (0, 0)),
        ),
        compiler_params=pltpu.CompilerParams(
            dimension_semantics=("arbitrary",)),
    )(xp, m1, m2, md)

    out = out_flat.reshape(N, H, W, Cout_p)[..., :Cout]
    if stride > 1:
        # conv with stride s == stride-1 conv subsampled every s-th output.
        out = out[:, ::stride, ::stride, :]
    return jnp.transpose(out, (0, 3, 1, 2))   # back to NCHW


def _ref_forward(x_nchw, w1, w2, wd, *, kernel, stride):
    """Pure-JAX reference (lax conv), NCHW in/out, HWIO weights."""
    P = _padding_for(kernel)
    dn = ('NCHW', 'HWIO', 'NCHW')

    def conv(x, w, s):
        return jax.lax.conv_general_dilated(
            x, w, (s, s), [(P, P), (P, P)], dimension_numbers=dn)

    out = jax.nn.relu(conv(x_nchw, w1, 1))
    out = conv(out, w2, 1)
    out = out + x_nchw
    return conv(out, wd, stride)


if __name__ == "__main__":
    # Module hyper-params (ResBlock_CH(inplanes, planes, stride, kernel), dp=False).
    inplanes, planes, stride, kernel = 4, 8, 1, 3
    N, H, W = 2, 16, 16

    key = jax.random.PRNGKey(0)
    kx, k1, k2, kd = jax.random.split(key, 4)

    # Input (NCHW, matching the PyTorch convention).
    x = jax.random.normal(kx, (N, inplanes, H, W), dtype=jnp.float32)

    # init_weights: normal(0, 0.001), no bias.  Stored directly in HWIO layout.
    w1 = 0.001 * jax.random.normal(k1, (kernel, kernel, inplanes, inplanes), jnp.float32)
    w2 = 0.001 * jax.random.normal(k2, (kernel, kernel, inplanes, inplanes), jnp.float32)
    wd = 0.001 * jax.random.normal(kd, (kernel, kernel, inplanes, planes), jnp.float32)

    out = resblock_ch_forward(x, w1, w2, wd, kernel=kernel, stride=stride)
    out = jax.block_until_ready(out)

    ref = jax.block_until_ready(_ref_forward(x, w1, w2, wd, kernel=kernel, stride=stride))

    assert out.shape == ref.shape, (out.shape, ref.shape)
    np.testing.assert_allclose(np.asarray(out), np.asarray(ref), rtol=1e-5, atol=1e-6)

    print("KERNEL_OK")
</pallas_src>

<mosaic_0001>
module attributes {stable_mosaic.version = 11 : i64} {
  func.func @_resblock_kernel(%arg0: i32, %arg1: memref<32x128xf32, #tpu.memory_space<vmem>>, %arg2: memref<384x128xf32, #tpu.memory_space<vmem>>, %arg3: memref<384x128xf32, #tpu.memory_space<vmem>>, %arg4: memref<384x128xf32, #tpu.memory_space<vmem>>, %arg5: memref<32x128xf32, #tpu.memory_space<vmem>>) attributes {dimension_semantics = [#tpu.dimension_semantics<arbitrary>], iteration_bounds = array<i64: 1>, scalar_prefetch = 0 : i64, scratch_operands = 0 : i64, tpu.core_type = #tpu.core_type<tc>, window_params = [{pipeline_mode = #tpu.pipeline_mode<synchronous>, transform_indices = @transform_0, window_bounds = array<i64: 32, 128>}, {pipeline_mode = #tpu.pipeline_mode<synchronous>, transform_indices = @transform_1, window_bounds = array<i64: 384, 128>}, {pipeline_mode = #tpu.pipeline_mode<synchronous>, transform_indices = @transform_2, window_bounds = array<i64: 384, 128>}, {pipeline_mode = #tpu.pipeline_mode<synchronous>, transform_indices = @transform_3, window_bounds = array<i64: 384, 128>}, {pipeline_mode = #tpu.pipeline_mode<synchronous>, transform_indices = @transform_4, window_bounds = array<i64: 32, 128>}]} {
    %c0 = arith.constant 0 : index
    %c0_0 = arith.constant 0 : index
    %0 = vector.load %arg1[%c0, %c0_0] : memref<32x128xf32, #tpu.memory_space<vmem>>, vector<32x128xf32>
    %1 = tpu.iota {dimensions = array<i32: 0>} : vector<32x128xi32>
    %c16_i32 = arith.constant 16 : i32
    %c0_i32 = arith.constant 0 : i32
    %2 = arith.cmpi eq, %c16_i32, %c0_i32 : i32
    %c1_i32 = arith.constant 1 : i32
    %3 = arith.select %2, %c1_i32, %c16_i32 : i32
    %4 = vector.broadcast %3 : i32 to vector<32x128xi32>
    %5 = arith.remsi %1, %4 : vector<32x128xi32>
    %c0_i32_1 = arith.constant 0 : i32
    %6 = vector.broadcast %c0_i32_1 : i32 to vector<32x128xi32>
    %7 = arith.cmpi ne, %5, %6 : vector<32x128xi32>
    %c0_i32_2 = arith.constant 0 : i32
    %8 = vector.broadcast %c0_i32_2 : i32 to vector<32x128xi32>
    %9 = arith.cmpi slt, %5, %8 : vector<32x128xi32>
    %c0_i32_3 = arith.constant 0 : i32
    %10 = arith.cmpi slt, %3, %c0_i32_3 : i32
    %11 = vector.broadcast %10 : i1 to vector<32x128xi1>
    %12 = vector.broadcast %11 : vector<32x128xi1> to vector<32x128xi1>
    %13 = arith.xori %9, %12 : vector<32x128xi1>
    %14 = arith.andi %13, %7 : vector<32x128xi1>
    %15 = vector.broadcast %3 : i32 to vector<32x128xi32>
    %16 = arith.addi %5, %15 : vector<32x128xi32>
    %17 = arith.select %14, %16, %5 : vector<32x128xi1>, vector<32x128xi32>
    %c-1_i32 = arith.constant -1 : i32
    %18 = vector.broadcast %c-1_i32 : i32 to vector<32x128xi32>
    %19 = arith.addi %17, %18 : vector<32x128xi32>
    %c0_i32_4 = arith.constant 0 : i32
    %20 = vector.broadcast %c0_i32_4 : i32 to vector<32x128xi32>
    %21 = arith.cmpi sge, %19, %20 : vector<32x128xi32>
    %c-1_i32_5 = arith.constant -1 : i32
    %22 = vector.broadcast %c-1_i32_5 : i32 to vector<32x128xi32>
    %23 = arith.addi %17, %22 : vector<32x128xi32>
    %c16_i32_6 = arith.constant 16 : i32
    %24 = vector.broadcast %c16_i32_6 : i32 to vector<32x128xi32>
    %25 = arith.cmpi slt, %23, %24 : vector<32x128xi32>
    %26 = arith.andi %21, %25 : vector<32x128xi1>
    %c1_i32_7 = arith.constant 1 : i32
    %27 = vector.broadcast %c1_i32_7 : i32 to vector<32x128xi32>
    %28 = arith.addi %17, %27 : vector<32x128xi32>
    %c0_i32_8 = arith.constant 0 : i32
    %29 = vector.broadcast %c0_i32_8 : i32 to vector<32x128xi32>
    %30 = arith.cmpi sge, %28, %29 : vector<32x128xi32>
    %c1_i32_9 = arith.constant 1 : i32
    %31 = vector.broadcast %c1_i32_9 : i32 to vector<32x128xi32>
    %32 = arith.addi %17, %31 : vector<32x128xi32>
    %c16_i32_10 = arith.constant 16 : i32
    %33 = vector.broadcast %c16_i32_10 : i32 to vector<32x128xi32>
    %34 = arith.cmpi slt, %32, %33 : vector<32x128xi32>
    %35 = arith.andi %30, %34 : vector<32x128xi1>
    %c1_i32_11 = arith.constant 1 : i32
    %36 = tpu.dynamic_rotate %0 by %c1_i32_11 dim 0 : vector<32x128xf32>, i32 -> vector<32x128xf32>
    %cst = arith.constant 0.000000e+00 : f32
    %37 = vector.broadcast %cst : f32 to vector<32x128xf32>
    %38 = arith.select %26, %36, %37 : vector<32x128xi1>, vector<32x128xf32>
    %c31_i32 = arith.constant 31 : i32
    %39 = tpu.dynamic_rotate %0 by %c31_i32 dim 0 : vector<32x128xf32>, i32 -> vector<32x128xf32>
    %cst_12 = arith.constant 0.000000e+00 : f32
    %40 = vector.broadcast %cst_12 : f32 to vector<32x128xf32>
    %41 = arith.select %35, %39, %40 : vector<32x128xi1>, vector<32x128xf32>
    %42 = tpu.concatenate %38, %0, %41 in 1 : vector<32x128xf32>, vector<32x128xf32>, vector<32x128xf32> -> vector<32x384xf32>
    %c0_13 = arith.constant 0 : index
    %c0_14 = arith.constant 0 : index
    %43 = vector.load %arg2[%c0_13, %c0_14] : memref<384x128xf32, #tpu.memory_space<vmem>>, vector<384x128xf32>
    %cst_15 = arith.constant dense<0.000000e+00> : vector<32x128xf32>
    %44 = tpu.matmul %42, %43, %cst_15 {dimension_numbers = #tpu.dot_dimension_numbers<[1], [0], [0], [1], [0, 0, 1, 1], [], []>} : vector<32x384xf32>, vector<384x128xf32>, vector<32x128xf32> -> vector<32x128xf32>
    %cst_16 = arith.constant 0.000000e+00 : f32
    %45 = vector.broadcast %cst_16 : f32 to vector<32x128xf32>
    %46 = arith.maximumf %44, %45 : vector<32x128xf32>
    %c1_i32_17 = arith.constant 1 : i32
    %47 = tpu.dynamic_rotate %46 by %c1_i32_17 dim 0 : vector<32x128xf32>, i32 -> vector<32x128xf32>
    %cst_18 = arith.constant 0.000000e+00 : f32
    %48 = vector.broadcast %cst_18 : f32 to vector<32x128xf32>
    %49 = arith.select %26, %47, %48 : vector<32x128xi1>, vector<32x128xf32>
    %c31_i32_19 = arith.constant 31 : i32
    %50 = tpu.dynamic_rotate %46 by %c31_i32_19 dim 0 : vector<32x128xf32>, i32 -> vector<32x128xf32>
    %cst_20 = arith.constant 0.000000e+00 : f32
    %51 = vector.broadcast %cst_20 : f32 to vector<32x128xf32>
    %52 = arith.select %35, %50, %51 : vector<32x128xi1>, vector<32x128xf32>
    %53 = tpu.concatenate %49, %46, %52 in 1 : vector<32x128xf32>, vector<32x128xf32>, vector<32x128xf32> -> vector<32x384xf32>
    %c0_21 = arith.constant 0 : index
    %c0_22 = arith.constant 0 : index
    %54 = vector.load %arg3[%c0_21, %c0_22] : memref<384x128xf32, #tpu.memory_space<vmem>>, vector<384x128xf32>
    %cst_23 = arith.constant dense<0.000000e+00> : vector<32x128xf32>
    %55 = tpu.matmul %53, %54, %cst_23 {dimension_numbers = #tpu.dot_dimension_numbers<[1], [0], [0], [1], [0, 0, 1, 1], [], []>} : vector<32x384xf32>, vector<384x128xf32>, vector<32x128xf32> -> vector<32x128xf32>
    %56 = arith.addf %55, %0 : vector<32x128xf32>
    %c1_i32_24 = arith.constant 1 : i32
    %57 = tpu.dynamic_rotate %56 by %c1_i32_24 dim 0 : vector<32x128xf32>, i32 -> vector<32x128xf32>
    %cst_25 = arith.constant 0.000000e+00 : f32
    %58 = vector.broadcast %cst_25 : f32 to vector<32x128xf32>
    %59 = arith.select %26, %57, %58 : vector<32x128xi1>, vector<32x128xf32>
    %c31_i32_26 = arith.constant 31 : i32
    %60 = tpu.dynamic_rotate %56 by %c31_i32_26 dim 0 : vector<32x128xf32>, i32 -> vector<32x128xf32>
    %cst_27 = arith.constant 0.000000e+00 : f32
    %61 = vector.broadcast %cst_27 : f32 to vector<32x128xf32>
    %62 = arith.select %35, %60, %61 : vector<32x128xi1>, vector<32x128xf32>
    %63 = tpu.concatenate %59, %56, %62 in 1 : vector<32x128xf32>, vector<32x128xf32>, vector<32x128xf32> -> vector<32x384xf32>
    %c0_28 = arith.constant 0 : index
    %c0_29 = arith.constant 0 : index
    %64 = vector.load %arg4[%c0_28, %c0_29] : memref<384x128xf32, #tpu.memory_space<vmem>>, vector<384x128xf32>
    %cst_30 = arith.constant dense<0.000000e+00> : vector<32x128xf32>
    %65 = tpu.matmul %63, %64, %cst_30 {dimension_numbers = #tpu.dot_dimension_numbers<[1], [0], [0], [1], [0, 0, 1, 1], [], []>} : vector<32x384xf32>, vector<384x128xf32>, vector<32x128xf32> -> vector<32x128xf32>
    %c0_31 = arith.constant 0 : index
    %c0_32 = arith.constant 0 : index
    %66 = vector.load %arg5[%c0_31, %c0_32] : memref<32x128xf32, #tpu.memory_space<vmem>>, vector<32x128xf32>
    tpu.vector_store %arg5[%c0_31, %c0_32], %65 {strides = array<i32>} : memref<32x128xf32, #tpu.memory_space<vmem>>, vector<32x128xf32>,
    return
  }
  func.func @transform_0(%arg0: i32) -> (i32, i32) {
    %c0_i32 = arith.constant 0 : i32
    %c0_i32_0 = arith.constant 0 : i32
    %c0_i32_1 = arith.constant 0 : i32
    return %c0_i32, %c0_i32_0 : i32, i32
  }
  func.func @transform_1(%arg0: i32) -> (i32, i32) {
    %c0_i32 = arith.constant 0 : i32
    %c0_i32_0 = arith.constant 0 : i32
    %c0_i32_1 = arith.constant 0 : i32
    return %c0_i32, %c0_i32_0 : i32, i32
  }
  func.func @transform_2(%arg0: i32) -> (i32, i32) {
    %c0_i32 = arith.constant 0 : i32
    %c0_i32_0 = arith.constant 0 : i32
    %c0_i32_1 = arith.constant 0 : i32
    return %c0_i32, %c0_i32_0 : i32, i32
  }
  func.func @transform_3(%arg0: i32) -> (i32, i32) {
    %c0_i32 = arith.constant 0 : i32
    %c0_i32_0 = arith.constant 0 : i32
    %c0_i32_1 = arith.constant 0 : i32
    return %c0_i32, %c0_i32_0 : i32, i32
  }
  func.func @transform_4(%arg0: i32) -> (i32, i32) {
    %c0_i32 = arith.constant 0 : i32
    %c0_i32_0 = arith.constant 0 : i32
    %c0_i32_1 = arith.constant 0 : i32
    return %c0_i32, %c0_i32_0 : i32, i32
  }
}

</mosaic_0001>

<llo_original>
// kernel: tpu_custom_call.1
$region0: #{tpu_custom_call.1}
  #allocation0 [shape = 'u32[]', space=smem, size = 0x4, offset = 0x4, fixed_abs, tag = 'smem constant byte address 0x4 - core index']
  #allocation1 [shape = 'u32[144,128]{1,0:T(1,128)}', space=vmem, size = 0x12000, scoped, tag = 'internal scratch']
  %s0 = inlined_call_operand.hbm [shape: f32[32,128], index: 0, kind: input, shape index: {}]
  %s1 = inlined_call_operand.hbm [shape: f32[384,128], index: 1, kind: input, shape index: {}]
  %s2 = inlined_call_operand.hbm [shape: f32[384,128], index: 2, kind: input, shape index: {}]
  %s3 = inlined_call_operand.hbm [shape: f32[384,128], index: 3, kind: input, shape index: {}]
  %s4 = inlined_call_operand.hbm [shape: f32[32,128], index: 4, kind: output, shape index: {}]
  %s5 = sld [smem:[#allocation0]]
  $region42: #{tpu_custom_call.1} parent=0
    _
  %s7 = ssub.s32 1, %s5
  %s8 = scalar_select 0, %s7, %s5
  $region1: #{tpu_custom_call.1} parent=0
    #allocation2 [shape = 'u8[16384]{0}', space=vmem, size = 0x4000, scoped, tag = 'input window, operand 0, single buffered']
    #allocation3 [shape = 's32[1]{0}', space=sflag, size = 0x4, scoped, tag = 'scoped memory for tpu_custom_call.1']
    #allocation4 [shape = 's32[1]{0}', space=sflag, size = 0x4, scoped, tag = 'scoped memory for tpu_custom_call.1']
    #allocation5 [shape = 'u8[196608]{0}', space=vmem, size = 0x30000, scoped, tag = 'input window, operand 1, single buffered']
    #allocation6 [shape = 's32[1]{0}', space=sflag, size = 0x4, scoped, tag = 'scoped memory for tpu_custom_call.1']
    #allocation7 [shape = 'u8[196608]{0}', space=vmem, size = 0x30000, scoped, tag = 'input window, operand 2, single buffered']
    #allocation8 [shape = 'u8[196608]{0}', space=vmem, size = 0x30000, scoped, tag = 'input window, operand 3, single buffered']
    #allocation9 [shape = 's32[1]{0}', space=sflag, size = 0x4, scoped, tag = 'scoped memory for tpu_custom_call.1']
    #allocation10 [shape = 'u8[16384]{0}', space=vmem, size = 0x4000, scoped, tag = 'output window, operand 0, single buffered']
    %9 = vsyncpa [#allocation3], 0
    %10 = vsyncpa [#allocation6], 0
    %11 = vsyncpa [#allocation9], 0
    %12 = vsyncpa [#allocation4], 0
    // Predicated region
    $region2: #{tpu_custom_call.1} parent=1 // pred_check
      _
    $region3: #{tpu_custom_call.1} parent=1 // pred_check_branch
      %14 = sbr.rel (0) target = $region5
    $region4: #{tpu_custom_call.1} parent=1 // pred_region
      %s16 = ssub.s32 512, 512
      %17 = vsyncadd [#allocation3], %s16
      %s18 = sshll.u32 [#allocation2], 4
      %s19 = int_to_ptr.vmem [resolvable:$true] %s18
      %24 = dma.hbm_to_vmem [thread:$0]  %s0, 512, %s19, [#allocation3], 128, 128, 8
    $region5: #{tpu_custom_call.1} parent=1 // pred_fallthru
      _
    // Predicated region
    $region6: #{tpu_custom_call.1} parent=1 // pred_check
      _
    $region7: #{tpu_custom_call.1} parent=1 // pred_check_branch
      %26 = sbr.rel (0) target = $region9
    $region8: #{tpu_custom_call.1} parent=1 // pred_region
      %s28 = ssub.s32 6144, 6144
      %29 = vsyncadd [#allocation6], %s28
      %s30 = sshll.u32 [#allocation5], 4
      %s31 = int_to_ptr.vmem [resolvable:$true] %s30
      %36 = dma.hbm_to_vmem [thread:$0]  %s1, 6144, %s31, [#allocation6], 128, 128, 8
    $region9: #{tpu_custom_call.1} parent=1 // pred_fallthru
      _
    // Predicated region
    $region10: #{tpu_custom_call.1} parent=1 // pred_check
      _
    $region11: #{tpu_custom_call.1} parent=1 // pred_check_branch
      %38 = sbr.rel (0) target = $region13
    $region12: #{tpu_custom_call.1} parent=1 // pred_region
      %s40 = ssub.s32 6144, 6144
      %41 = vsyncadd [#allocation6], %s40
      %s42 = sshll.u32 [#allocation7], 4
      %s43 = int_to_ptr.vmem [resolvable:$true] %s42
      %48 = dma.hbm_to_vmem [thread:$0]  %s2, 6144, %s43, [#allocation6], 128, 128, 8
    $region13: #{tpu_custom_call.1} parent=1 // pred_fallthru
      _
    // Predicated region
    $region14: #{tpu_custom_call.1} parent=1 // pred_check
      _
    $region15: #{tpu_custom_call.1} parent=1 // pred_check_branch
      %50 = sbr.rel (0) target = $region17
    $region16: #{tpu_custom_call.1} parent=1 // pred_region
      %s52 = ssub.s32 6144, 6144
      %53 = vsyncadd [#allocation9], %s52
      %s54 = sshll.u32 [#allocation8], 4
      %s55 = int_to_ptr.vmem [resolvable:$true] %s54
      %60 = dma.hbm_to_vmem [thread:$0]  %s3, 6144, %s55, [#allocation9], 128, 128, 8
    $region17: #{tpu_custom_call.1} parent=1 // pred_fallthru
      _
    // Predicated region
    $region18: #{tpu_custom_call.1} parent=1 // pred_check
      _
    $region19: #{tpu_custom_call.1} parent=1 // pred_check_branch
      %62 = sbr.rel (0) target = $region21
    $region20: #{tpu_custom_call.1} parent=1 // pred_region
      %63 = dma.done [#allocation3], 512
    $region21: #{tpu_custom_call.1} parent=1 // pred_fallthru
      _
    // Predicated region
    $region22: #{tpu_custom_call.1} parent=1 // pred_check
      _
    $region23: #{tpu_custom_call.1} parent=1 // pred_check_branch
      %65 = sbr.rel (0) target = $region25
    $region24: #{tpu_custom_call.1} parent=1 // pred_region
      %66 = dma.done [#allocation6], 6144
    $region25: #{tpu_custom_call.1} parent=1 // pred_fallthru
      _
    // Predicated region
    $region26: #{tpu_custom_call.1} parent=1 // pred_check
      _
    $region27: #{tpu_custom_call.1} parent=1 // pred_check_branch
      %68 = sbr.rel (0) target = $region29
    $region28: #{tpu_custom_call.1} parent=1 // pred_region
      %69 = dma.done [#allocation6], 6144
    $region29: #{tpu_custom_call.1} parent=1 // pred_fallthru
      _
    // Predicated region
    $region30: #{tpu_custom_call.1} parent=1 // pred_check
      _
    $region31: #{tpu_custom_call.1} parent=1 // pred_check_branch
      %71 = sbr.rel (0) target = $region33
    $region32: #{tpu_custom_call.1} parent=1 // pred_region
      %72 = dma.done [#allocation9], 6144
    $region33: #{tpu_custom_call.1} parent=1 // pred_fallthru
      _
    %v73 = vld [vmem:[#allocation2] sm:$0xff]
    %v74 = vld [vmem:[#allocation2 + $0x8] sm:$0xff]
    %v75 = vld [vmem:[#allocation2 + $0x10] sm:$0xff]
    %v76 = vld [vmem:[#allocation2 + $0x18] sm:$0xff]
    %v77 = vlaneseq
    %v78 = vshrl.u32 %v77, 7
    %v79 = vadd.s32 %v78, 8
    %v80 = vadd.s32 %v78, 16
    %v81 = vadd.s32 %v78, 24
    %vm82 = vcmp.lt.s32.totalorder %v78, 0
    %v83 = vsub.s32 0, %v78
    %v84 = vsel %vm82, %v83, %v78
    %v85 = vshrl.u32 %v84, 4
    %v86 = vand.u32 %v84, 15
    %v87 = vsub.s32 0, %v86
    %v88 = vsel %vm82, %v87, %v86
    %vm89 = vcmp.lt.s32.totalorder %v79, 0
    %v90 = vsub.s32 0, %v79
    %v91 = vsel %vm89, %v90, %v79
    %v92 = vshrl.u32 %v91, 4
    %v93 = vand.u32 %v91, 15
    %v94 = vsub.s32 0, %v93
    %v95 = vsel %vm89, %v94, %v93
    %vm96 = vcmp.lt.s32.totalorder %v80, 0
    %v97 = vsub.s32 0, %v80
    %v98 = vsel %vm96, %v97, %v80
    %v99 = vshrl.u32 %v98, 4
    %v100 = vand.u32 %v98, 15
    %v101 = vsub.s32 0, %v100
    %v102 = vsel %vm96, %v101, %v100
    %vm103 = vcmp.lt.s32.totalorder %v81, 0
    %v104 = vsub.s32 0, %v81
    %v105 = vsel %vm103, %v104, %v81
    %v106 = vshrl.u32 %v105, 4
    %v107 = vand.u32 %v105, 15
    %v108 = vsub.s32 0, %v107
    %v109 = vsel %vm103, %v108, %v107
    %vm110 = vcmp.ne.s32.totalorder %v88, 0
    %vm111 = vcmp.ne.s32.totalorder %v95, 0
    %vm112 = vcmp.ne.s32.totalorder %v102, 0
    %vm113 = vcmp.ne.s32.totalorder %v109, 0
    %vm114 = vcmp.lt.s32.totalorder %v88, 0
    %vm115 = vcmp.lt.s32.totalorder %v95, 0
    %vm116 = vcmp.lt.s32.totalorder %v102, 0
    %vm117 = vcmp.lt.s32.totalorder %v109, 0
    %vm118 = vmand %vm114, %vm110
    %vm119 = vmand %vm115, %vm111
    %vm120 = vmand %vm116, %vm112
    %vm121 = vmand %vm117, %vm113
    %v122 = vadd.s32 %v88, 16
    %v123 = vadd.s32 %v95, 16
    %v124 = vadd.s32 %v102, 16
    %v125 = vadd.s32 %v109, 16
    %v126 = vsel %vm118, %v122, %v88
    %v127 = vsel %vm119, %v123, %v95
    %v128 = vsel %vm120, %v124, %v102
    %v129 = vsel %vm121, %v125, %v109
    %v130 = vadd.s32 %v126, 4294967295
    %v131 = vadd.s32 %v127, 4294967295
    %v132 = vadd.s32 %v128, 4294967295
    %v133 = vadd.s32 %v129, 4294967295
    %vm134 = vcmp.ge.s32.totalorder %v130, 0
    %vm135 = vcmp.ge.s32.totalorder %v131, 0
    %vm136 = vcmp.ge.s32.totalorder %v132, 0
    %vm137 = vcmp.ge.s32.totalorder %v133, 0
    %vm138 = vcmp.lt.s32.totalorder %v130, 16
    %vm139 = vcmp.lt.s32.totalorder %v131, 16
    %vm140 = vcmp.lt.s32.totalorder %v132, 16
    %vm141 = vcmp.lt.s32.totalorder %v133, 16
    %vm142 = vmand %vm134, %vm138
    %vm143 = vmand %vm135, %vm139
    %vm144 = vmand %vm136, %vm140
    %vm145 = vmand %vm137, %vm141
    %v146 = vadd.s32 %v126, 1
    %v147 = vadd.s32 %v127, 1
    %v148 = vadd.s32 %v128, 1
    %v149 = vadd.s32 %v129, 1
    %vm150 = vcmp.ge.s32.totalorder %v146, 0
    %vm151 = vcmp.ge.s32.totalorder %v147, 0
    %vm152 = vcmp.ge.s32.totalorder %v148, 0
    %vm153 = vcmp.ge.s32.totalorder %v149, 0
    %vm154 = vcmp.lt.s32.totalorder %v146, 16
    %vm155 = vcmp.lt.s32.totalorder %v147, 16
    %vm156 = vcmp.lt.s32.totalorder %v148, 16
    %vm157 = vcmp.lt.s32.totalorder %v149, 16
    %vm158 = vmand %vm150, %vm154
    %vm159 = vmand %vm151, %vm155
    %vm160 = vmand %vm152, %vm156
    %vm161 = vmand %vm153, %vm157
    %v162 = vrot.slane %v73, 7
    %v163 = vrot.slane %v74, 7
    %v164 = vrot.slane %v75, 7
    %v165 = vrot.slane %v76, 7
    %vm166 = vcmp.lt.s32.totalorder %v78, 1
    %v167 = vsel %vm166, %v164, %v165
    %v168 = vsel %vm166, %v163, %v164
    %v169 = vsel %vm166, %v162, %v163
    %v170 = vsel %vm166, %v165, %v162
    %v171 = vsel %vm142, %v170, 0.0
    %v172 = vsel %vm143, %v169, 0.0
    %v173 = vsel %vm144, %v168, 0.0
    %v174 = vsel %vm145, %v167, 0.0
    %v175 = vrot.slane %v73, 1
    %v176 = vrot.slane %v74, 1
    %v177 = vrot.slane %v75, 1
    %v178 = vrot.slane %v76, 1
    %vm179 = vcmp.lt.s32.totalorder %v78, 7
    %v180 = vsel %vm179, %v177, %v178
    %v181 = vsel %vm179, %v176, %v177
    %v182 = vsel %vm179, %v175, %v176
    %v183 = vsel %vm179, %v178, %v175
    %v184 = vsel %vm158, %v182, 0.0
    %v185 = vsel %vm159, %v181, 0.0
    %v186 = vsel %vm160, %v180, 0.0
    %v187 = vsel %vm161, %v183, 0.0
    %v188 = vld [vmem:[#allocation5] sm:$0xff]
    %v189 = vld [vmem:[#allocation5 + $0x8] sm:$0xff]
    %v190 = vld [vmem:[#allocation5 + $0x10] sm:$0xff]
    %v191 = vld [vmem:[#allocation5 + $0x18] sm:$0xff]
    %v192 = vld [vmem:[#allocation5 + $0x20] sm:$0xff]
    %v193 = vld [vmem:[#allocation5 + $0x28] sm:$0xff]
    %v194 = vld [vmem:[#allocation5 + $0x30] sm:$0xff]
    %v195 = vld [vmem:[#allocation5 + $0x38] sm:$0xff]
    %v196 = vld [vmem:[#allocation5 + $0x40] sm:$0xff]
    %v197 = vld [vmem:[#allocation5 + $0x48] sm:$0xff]
    %v198 = vld [vmem:[#allocation5 + $0x50] sm:$0xff]
    %v199 = vld [vmem:[#allocation5 + $0x58] sm:$0xff]
    %v200 = vld [vmem:[#allocation5 + $0x60] sm:$0xff]
    %v201 = vld [vmem:[#allocation5 + $0x68] sm:$0xff]
    %v202 = vld [vmem:[#allocation5 + $0x70] sm:$0xff]
    %v203 = vld [vmem:[#allocation5 + $0x78] sm:$0xff]
    %v204 = vld [vmem:[#allocation5 + $0x80] sm:$0xff]
    %v205 = vld [vmem:[#allocation5 + $0x88] sm:$0xff]
    %v206 = vld [vmem:[#allocation5 + $0x90] sm:$0xff]
    %v207 = vld [vmem:[#allocation5 + $0x98] sm:$0xff]
    %v208 = vld [vmem:[#allocation5 + $0xa0] sm:$0xff]
    %v209 = vld [vmem:[#allocation5 + $0xa8] sm:$0xff]
    %v210 = vld [vmem:[#allocation5 + $0xb0] sm:$0xff]
    %v211 = vld [vmem:[#allocation5 + $0xb8] sm:$0xff]
    %v212 = vld [vmem:[#allocation5 + $0xc0] sm:$0xff]
    %v213 = vld [vmem:[#allocation5 + $0xc8] sm:$0xff]
    %v214 = vld [vmem:[#allocation5 + $0xd0] sm:$0xff]
    %v215 = vld [vmem:[#allocation5 + $0xd8] sm:$0xff]
    %v216 = vld [vmem:[#allocation5 + $0xe0] sm:$0xff]
    %v217 = vld [vmem:[#allocation5 + $0xe8] sm:$0xff]
    %v218 = vld [vmem:[#allocation5 + $0xf0] sm:$0xff]
    %v219 = vld [vmem:[#allocation5 + $0xf8] sm:$0xff]
    %v220 = vld [vmem:[#allocation5 + $0x100] sm:$0xff]
    %v221 = vld [vmem:[#allocation5 + $0x108] sm:$0xff]
    %v222 = vld [vmem:[#allocation5 + $0x110] sm:$0xff]
    %v223 = vld [vmem:[#allocation5 + $0x118] sm:$0xff]
    %v224 = vld [vmem:[#allocation5 + $0x120] sm:$0xff]
    %v225 = vld [vmem:[#allocation5 + $0x128] sm:$0xff]
    %v226 = vld [vmem:[#allocation5 + $0x130] sm:$0xff]
    %v227 = vld [vmem:[#allocation5 + $0x138] sm:$0xff]
    %v228 = vld [vmem:[#allocation5 + $0x140] sm:$0xff]
    %v229 = vld [vmem:[#allocation5 + $0x148] sm:$0xff]
    %v230 = vld [vmem:[#allocation5 + $0x150] sm:$0xff]
    %v231 = vld [vmem:[#allocation5 + $0x158] sm:$0xff]
    %v232 = vld [vmem:[#allocation5 + $0x160] sm:$0xff]
    %v233 = vld [vmem:[#allocation5 + $0x168] sm:$0xff]
    %v234 = vld [vmem:[#allocation5 + $0x170] sm:$0xff]
    %v235 = vld [vmem:[#allocation5 + $0x178] sm:$0xff]
    %236 = vmatprep.subr.mxu0 0.0
    %237 = vmatpush1.msra.mxu0 %v203
    %238 = vmatprep.subr.mxu0 0.0
    %239 = vmatpush1.msra.mxu0 %v202
    %240 = vmatprep.subr.mxu0 0.0
    %241 = vmatpush1.msra.mxu0 %v201
    %242 = vmatprep.subr.mxu0 0.0
    %243 = vmatpush1.msra.mxu0 %v200
    %244 = vmatprep.subr.mxu0 0.0
    %245 = vmatpush1.msra.mxu0 %v199
    %246 = vmatprep.subr.mxu0 0.0
    %247 = vmatpush1.msra.mxu0 %v198
    %248 = vmatprep.subr.mxu0 0.0
    %249 = vmatpush1.msra.mxu0 %v197
    %250 = vmatprep.subr.mxu0 0.0
    %251 = vmatpush1.msra.mxu0 %v196
    %252 = vmatprep.subr.mxu0 0.0
    %253 = vmatpush1.msra.mxu0 %v195
    %254 = vmatprep.subr.mxu0 0.0
    %255 = vmatpush1.msra.mxu0 %v194
    %256 = vmatprep.subr.mxu0 0.0
    %257 = vmatpush1.msra.mxu0 %v193
    %258 = vmatprep.subr.mxu0 0.0
    %259 = vmatpush1.msra.mxu0 %v192
    %260 = vmatprep.subr.mxu0 0.0
    %261 = vmatpush1.msra.mxu0 %v191
    %262 = vmatprep.subr.mxu0 0.0
    %263 = vmatpush1.msra.mxu0 %v190
    %264 = vmatprep.subr.mxu0 0.0
    %265 = vmatpush1.msra.mxu0 %v189
    %266 = vmatprep.subr.mxu0 0.0
    %267 = vmatpush1.msra.mxu0 %v188
    %268 = vmatprep.subr.mxu0 0.0
    %269 = vmatpush2.msra.mxu0 %v219
    %270 = vmatprep.subr.mxu0 0.0
    %271 = vmatpush2.msra.mxu0 %v218
    %272 = vmatprep.subr.mxu0 0.0
    %273 = vmatpush2.msra.mxu0 %v217
    %274 = vmatprep.subr.mxu0 0.0
    %275 = vmatpush2.msra.mxu0 %v216
    %276 = vmatprep.subr.mxu0 0.0
    %277 = vmatpush2.msra.mxu0 %v215
    %278 = vmatprep.subr.mxu0 0.0
    %279 = vmatpush2.msra.mxu0 %v214
    %280 = vmatprep.subr.mxu0 0.0
    %281 = vmatpush2.msra.mxu0 %v213
    %282 = vmatprep.subr.mxu0 0.0
    %283 = vmatpush2.msra.mxu0 %v212
    %284 = vmatprep.subr.mxu0 0.0
    %285 = vmatpush2.msra.mxu0 %v211
    %286 = vmatprep.subr.mxu0 0.0
    %287 = vmatpush2.msra.mxu0 %v210
    %288 = vmatprep.subr.mxu0 0.0
    %289 = vmatpush2.msra.mxu0 %v209
    %290 = vmatprep.subr.mxu0 0.0
    %291 = vmatpush2.msra.mxu0 %v208
    %292 = vmatprep.subr.mxu0 0.0
    %293 = vmatpush2.msra.mxu0 %v207
    %294 = vmatprep.subr.mxu0 0.0
    %295 = vmatpush2.msra.mxu0 %v206
    %296 = vmatprep.subr.mxu0 0.0
    %297 = vmatpush2.msra.mxu0 %v205
    %298 = vmatprep.subr.mxu0 0.0
    %299 = vmatpush2.msra.mxu0 %v204
    %300 = vmatprep.mubr.f32.mxu0 %v73
    %301 = vmatmul.mubr.f32.gmra.mxu0 %v171
    %v302 = vpop.f32.mrf.mxu0
    %v303 = vadd.f32 0.0, %v302
    %v304 = vpop.f32.mrf.mxu0
    %305 = vmatprep.mubr.f32.mxu0 %v74
    %306 = vmatmul.mubr.f32.gmra.mxu0 %v172
    %v307 = vpop.f32.mrf.mxu0
    %v308 = vadd.f32 0.0, %v307
    %v309 = vpop.f32.mrf.mxu0
    %310 = vmatprep.mubr.f32.mxu0 %v75
    %311 = vmatmul.mubr.f32.gmra.mxu0 %v173
    %v312 = vpop.f32.mrf.mxu0
    %v313 = vadd.f32 0.0, %v312
    %v314 = vpop.f32.mrf.mxu0
    %315 = vmatprep.mubr.f32.mxu0 %v76
    %316 = vmatmul.mubr.f32.gmra.mxu0 %v174
    %v317 = vpop.f32.mrf.mxu0
    %v318 = vadd.f32 0.0, %v317
    %v319 = vpop.f32.mrf.mxu0
    %320 = vdwg.mxu0
    %321 = vmatprep.subr.mxu0 0.0
    %322 = vmatpush1.msra.mxu0 %v235
    %323 = vmatprep.subr.mxu0 0.0
    %324 = vmatpush1.msra.mxu0 %v234
    %325 = vmatprep.subr.mxu0 0.0
    %326 = vmatpush1.msra.mxu0 %v233
    %327 = vmatprep.subr.mxu0 0.0
    %328 = vmatpush1.msra.mxu0 %v232
    %329 = vmatprep.subr.mxu0 0.0
    %330 = vmatpush1.msra.mxu0 %v231
    %331 = vmatprep.subr.mxu0 0.0
    %332 = vmatpush1.msra.mxu0 %v230
    %333 = vmatprep.subr.mxu0 0.0
    %334 = vmatpush1.msra.mxu0 %v229
    %335 = vmatprep.subr.mxu0 0.0
    %336 = vmatpush1.msra.mxu0 %v228
    %337 = vmatprep.subr.mxu0 0.0
    %338 = vmatpush1.msra.mxu0 %v227
    %339 = vmatprep.subr.mxu0 0.0
    %340 = vmatpush1.msra.mxu0 %v226
    %341 = vmatprep.subr.mxu0 0.0
    %342 = vmatpush1.msra.mxu0 %v225
    %343 = vmatprep.subr.mxu0 0.0
    %344 = vmatpush1.msra.mxu0 %v224
    %345 = vmatprep.subr.mxu0 0.0
    %346 = vmatpush1.msra.mxu0 %v223
    %347 = vmatprep.subr.mxu0 0.0
    %348 = vmatpush1.msra.mxu0 %v222
    %349 = vmatprep.subr.mxu0 0.0
    %350 = vmatpush1.msra.mxu0 %v221
    %351 = vmatprep.subr.mxu0 0.0
    %352 = vmatpush1.msra.mxu0 %v220
    %353 = vmatprep.subr.mxu0 0.0
    %354 = vmatpush2.msra.mxu0 0.0
    %355 = vmatprep.subr.mxu0 0.0
    %356 = vmatpush2.msra.mxu0 0.0
    %357 = vmatprep.subr.mxu0 0.0
    %358 = vmatpush2.msra.mxu0 0.0
    %359 = vmatprep.subr.mxu0 0.0
    %360 = vmatpush2.msra.mxu0 0.0
    %361 = vmatprep.subr.mxu0 0.0
    %362 = vmatpush2.msra.mxu0 0.0
    %363 = vmatprep.subr.mxu0 0.0
    %364 = vmatpush2.msra.mxu0 0.0
    %365 = vmatprep.subr.mxu0 0.0
    %366 = vmatpush2.msra.mxu0 0.0
    %367 = vmatprep.subr.mxu0 0.0
    %368 = vmatpush2.msra.mxu0 0.0
    %369 = vmatprep.subr.mxu0 0.0
    %370 = vmatpush2.msra.mxu0 0.0
    %371 = vmatprep.subr.mxu0 0.0
    %372 = vmatpush2.msra.mxu0 0.0
    %373 = vmatprep.subr.mxu0 0.0
    %374 = vmatpush2.msra.mxu0 0.0
    %375 = vmatprep.subr.mxu0 0.0
    %376 = vmatpush2.msra.mxu0 0.0
    %377 = vmatprep.subr.mxu0 0.0
    %378 = vmatpush2.msra.mxu0 0.0
    %379 = vmatprep.subr.mxu0 0.0
    %380 = vmatpush2.msra.mxu0 0.0
    %381 = vmatprep.subr.mxu0 0.0
    %382 = vmatpush2.msra.mxu0 0.0
    %383 = vmatprep.subr.mxu0 0.0
    %384 = vmatpush2.msra.mxu0 0.0
    %385 = vmatprep.mubr.f32.mxu0 0.0
    %386 = vmatmul.mubr.f32.gmra.mxu0 %v184
    %v387 = vpop.f32.mrf.mxu0
    %v388 = vadd.f32 %v303, %v387
    %v389 = vpop.f32.mrf.mxu0
    %390 = vmatprep.mubr.f32.mxu0 0.0
    %391 = vmatmul.mubr.f32.gmra.mxu0 %v185
    %v392 = vpop.f32.mrf.mxu0
    %v393 = vadd.f32 %v308, %v392
    %v394 = vpop.f32.mrf.mxu0
    %395 = vmatprep.mubr.f32.mxu0 0.0
    %396 = vmatmul.mubr.f32.gmra.mxu0 %v186
    %v397 = vpop.f32.mrf.mxu0
    %v398 = vadd.f32 %v313, %v397
    %v399 = vpop.f32.mrf.mxu0
    %400 = vmatprep.mubr.f32.mxu0 0.0
    %401 = vmatmul.mubr.f32.gmra.mxu0 %v187
    %v402 = vpop.f32.mrf.mxu0
    %v403 = vadd.f32 %v318, %v402
    %v404 = vpop.f32.mrf.mxu0
    %405 = vdwg.mxu0
    %v406 = vmax.f32 %v388, 0.0
    %v407 = vmax.f32 %v393, 0.0
    %v408 = vmax.f32 %v398, 0.0
    %v409 = vmax.f32 %v403, 0.0
    %v410 = vrot.slane %v406, 7
    %v411 = vrot.slane %v407, 7
    %v412 = vrot.slane %v408, 7
    %v413 = vrot.slane %v409, 7
    %v414 = vsel %vm166, %v412, %v413
    %v415 = vsel %vm166, %v411, %v412
    %v416 = vsel %vm166, %v410, %v411
    %v417 = vsel %vm166, %v413, %v410
    %v418 = vsel %vm142, %v417, 0.0
    %v419 = vsel %vm143, %v416, 0.0
    %v420 = vsel %vm144, %v415, 0.0
    %v421 = vsel %vm145, %v414, 0.0
    %v422 = vrot.slane %v406, 1
    %v423 = vrot.slane %v407, 1
    %v424 = vrot.slane %v408, 1
    %v425 = vrot.slane %v409, 1
    %v426 = vsel %vm179, %v424, %v425
    %v427 = vsel %vm179, %v423, %v424
    %v428 = vsel %vm179, %v422, %v423
    %v429 = vsel %vm179, %v425, %v422
    %v430 = vsel %vm158, %v428, 0.0
    %v431 = vsel %vm159, %v427, 0.0
    %v432 = vsel %vm160, %v426, 0.0
    %v433 = vsel %vm161, %v429, 0.0
    %v434 = vld [vmem:[#allocation7] sm:$0xff]
    %v435 = vld [vmem:[#allocation7 + $0x8] sm:$0xff]
    %v436 = vld [vmem:[#allocation7 + $0x10] sm:$0xff]
    %v437 = vld [vmem:[#allocation7 + $0x18] sm:$0xff]
    %v438 = vld [vmem:[#allocation7 + $0x20] sm:$0xff]
    %v439 = vld [vmem:[#allocation7 + $0x28] sm:$0xff]
    %v440 = vld [vmem:[#allocation7 + $0x30] sm:$0xff]
    %v441 = vld [vmem:[#allocation7 + $0x38] sm:$0xff]
    %v442 = vld [vmem:[#allocation7 + $0x40] sm:$0xff]
    %v443 = vld [vmem:[#allocation7 + $0x48] sm:$0xff]
    %v444 = vld [vmem:[#allocation7 + $0x50] sm:$0xff]
    %v445 = vld [vmem:[#allocation7 + $0x58] sm:$0xff]
    %v446 = vld [vmem:[#allocation7 + $0x60] sm:$0xff]
    %v447 = vld [vmem:[#allocation7 + $0x68] sm:$0xff]
    %v448 = vld [vmem:[#allocation7 + $0x70] sm:$0xff]
    %v449 = vld [vmem:[#allocation7 + $0x78] sm:$0xff]
    %v450 = vld [vmem:[#allocation7 + $0x80] sm:$0xff]
    %v451 = vld [vmem:[#allocation7 + $0x88] sm:$0xff]
    %v452 = vld [vmem:[#allocation7 + $0x90] sm:$0xff]
    %v453 = vld [vmem:[#allocation7 + $0x98] sm:$0xff]
    %v454 = vld [vmem:[#allocation7 + $0xa0] sm:$0xff]
    %v455 = vld [vmem:[#allocation7 + $0xa8] sm:$0xff]
    %v456 = vld [vmem:[#allocation7 + $0xb0] sm:$0xff]
    %v457 = vld [vmem:[#allocation7 + $0xb8] sm:$0xff]
    %v458 = vld [vmem:[#allocation7 + $0xc0] sm:$0xff]
    %v459 = vld [vmem:[#allocation7 + $0xc8] sm:$0xff]
    %v460 = vld [vmem:[#allocation7 + $0xd0] sm:$0xff]
    %v461 = vld [vmem:[#allocation7 + $0xd8] sm:$0xff]
    %v462 = vld [vmem:[#allocation7 + $0xe0] sm:$0xff]
    %v463 = vld [vmem:[#allocation7 + $0xe8] sm:$0xff]
    %v464 = vld [vmem:[#allocation7 + $0xf0] sm:$0xff]
    %v465 = vld [vmem:[#allocation7 + $0xf8] sm:$0xff]
    %v466 = vld [vmem:[#allocation7 + $0x100] sm:$0xff]
    %v467 = vld [vmem:[#allocation7 + $0x108] sm:$0xff]
    %v468 = vld [vmem:[#allocation7 + $0x110] sm:$0xff]
    %v469 = vld [vmem:[#allocation7 + $0x118] sm:$0xff]
    %v470 = vld [vmem:[#allocation7 + $0x120] sm:$0xff]
    %v471 = vld [vmem:[#allocation7 + $0x128] sm:$0xff]
    %v472 = vld [vmem:[#allocation7 + $0x130] sm:$0xff]
    %v473 = vld [vmem:[#allocation7 + $0x138] sm:$0xff]
    %v474 = vld [vmem:[#allocation7 + $0x140] sm:$0xff]
    %v475 = vld [vmem:[#allocation7 + $0x148] sm:$0xff]
    %v476 = vld [vmem:[#allocation7 + $0x150] sm:$0xff]
    %v477 = vld [vmem:[#allocation7 + $0x158] sm:$0xff]
    %v478 = vld [vmem:[#allocation7 + $0x160] sm:$0xff]
    %v479 = vld [vmem:[#allocation7 + $0x168] sm:$0xff]
    %v480 = vld [vmem:[#allocation7 + $0x170] sm:$0xff]
    %v481 = vld [vmem:[#allocation7 + $0x178] sm:$0xff]
    %482 = vmatprep.subr.mxu0 0.0
    %483 = vmatpush1.msra.mxu0 %v449
    %484 = vmatprep.subr.mxu0 0.0
    %485 = vmatpush1.msra.mxu0 %v448
    %486 = vmatprep.subr.mxu0 0.0
    %487 = vmatpush1.msra.mxu0 %v447
    %488 = vmatprep.subr.mxu0 0.0
    %489 = vmatpush1.msra.mxu0 %v446
    %490 = vmatprep.subr.mxu0 0.0
    %491 = vmatpush1.msra.mxu0 %v445
    %492 = vmatprep.subr.mxu0 0.0
    %493 = vmatpush1.msra.mxu0 %v444
    %494 = vmatprep.subr.mxu0 0.0
    %495 = vmatpush1.msra.mxu0 %v443
    %496 = vmatprep.subr.mxu0 0.0
    %497 = vmatpush1.msra.mxu0 %v442
    %498 = vmatprep.subr.mxu0 0.0
    %499 = vmatpush1.msra.mxu0 %v441
    %500 = vmatprep.subr.mxu0 0.0
    %501 = vmatpush1.msra.mxu0 %v440
    %502 = vmatprep.subr.mxu0 0.0
    %503 = vmatpush1.msra.mxu0 %v439
    %504 = vmatprep.subr.mxu0 0.0
    %505 = vmatpush1.msra.mxu0 %v438
    %506 = vmatprep.subr.mxu0 0.0
    %507 = vmatpush1.msra.mxu0 %v437
    %508 = vmatprep.subr.mxu0 0.0
    %509 = vmatpush1.msra.mxu0 %v436
    %510 = vmatprep.subr.mxu0 0.0
    %511 = vmatpush1.msra.mxu0 %v435
    %512 = vmatprep.subr.mxu0 0.0
    %513 = vmatpush1.msra.mxu0 %v434
    %514 = vmatprep.subr.mxu0 0.0
    %515 = vmatpush2.msra.mxu0 %v465
    %516 = vmatprep.subr.mxu0 0.0
    %517 = vmatpush2.msra.mxu0 %v464
    %518 = vmatprep.subr.mxu0 0.0
    %519 = vmatpush2.msra.mxu0 %v463
    %520 = vmatprep.subr.mxu0 0.0
    %521 = vmatpush2.msra.mxu0 %v462
    %522 = vmatprep.subr.mxu0 0.0
    %523 = vmatpush2.msra.mxu0 %v461
    %524 = vmatprep.subr.mxu0 0.0
    %525 = vmatpush2.msra.mxu0 %v460
    %526 = vmatprep.subr.mxu0 0.0
    %527 = vmatpush2.msra.mxu0 %v459
    %528 = vmatprep.subr.mxu0 0.0
    %529 = vmatpush2.msra.mxu0 %v458
    %530 = vmatprep.subr.mxu0 0.0
    %531 = vmatpush2.msra.mxu0 %v457
    %532 = vmatprep.subr.mxu0 0.0
    %533 = vmatpush2.msra.mxu0 %v456
    %534 = vmatprep.subr.mxu0 0.0
    %535 = vmatpush2.msra.mxu0 %v455
    %536 = vmatprep.subr.mxu0 0.0
    %537 = vmatpush2.msra.mxu0 %v454
    %538 = vmatprep.subr.mxu0 0.0
    %539 = vmatpush2.msra.mxu0 %v453
    %540 = vmatprep.subr.mxu0 0.0
    %541 = vmatpush2.msra.mxu0 %v452
    %542 = vmatprep.subr.mxu0 0.0
    %543 = vmatpush2.msra.mxu0 %v451
    %544 = vmatprep.subr.mxu0 0.0
    %545 = vmatpush2.msra.mxu0 %v450
    %546 = vmatprep.mubr.f32.mxu0 %v406
    %547 = vmatmul.mubr.f32.gmra.mxu0 %v418
    %v548 = vpop.f32.mrf.mxu0
    %v549 = vadd.f32 %v73, %v548
    %v550 = vpop.f32.mrf.mxu0
    %551 = vmatprep.mubr.f32.mxu0 %v407
    %552 = vmatmul.mubr.f32.gmra.mxu0 %v419
    %v553 = vpop.f32.mrf.mxu0
    %v554 = vadd.f32 %v74, %v553
    %v555 = vpop.f32.mrf.mxu0
    %556 = vmatprep.mubr.f32.mxu0 %v408
    %557 = vmatmul.mubr.f32.gmra.mxu0 %v420
    %v558 = vpop.f32.mrf.mxu0
    %v559 = vadd.f32 %v75, %v558
    %v560 = vpop.f32.mrf.mxu0
    %561 = vmatprep.mubr.f32.mxu0 %v409
    %562 = vmatmul.mubr.f32.gmra.mxu0 %v421
    %v563 = vpop.f32.mrf.mxu0
    %v564 = vadd.f32 %v76, %v563
    %v565 = vpop.f32.mrf.mxu0
    %566 = vdwg.mxu0
    %567 = vmatprep.subr.mxu0 0.0
    %568 = vmatpush1.msra.mxu0 %v481
    %569 = vmatprep.subr.mxu0 0.0
    %570 = vmatpush1.msra.mxu0 %v480
    %571 = vmatprep.subr.mxu0 0.0
    %572 = vmatpush1.msra.mxu0 %v479
    %573 = vmatprep.subr.mxu0 0.0
    %574 = vmatpush1.msra.mxu0 %v478
    %575 = vmatprep.subr.mxu0 0.0
    %576 = vmatpush1.msra.mxu0 %v477
    %577 = vmatprep.subr.mxu0 0.0
    %578 = vmatpush1.msra.mxu0 %v476
    %579 = vmatprep.subr.mxu0 0.0
    %580 = vmatpush1.msra.mxu0 %v475
    %581 = vmatprep.subr.mxu0 0.0
    %582 = vmatpush1.msra.mxu0 %v474
    %583 = vmatprep.subr.mxu0 0.0
    %584 = vmatpush1.msra.mxu0 %v473
    %585 = vmatprep.subr.mxu0 0.0
    %586 = vmatpush1.msra.mxu0 %v472
    %587 = vmatprep.subr.mxu0 0.0
    %588 = vmatpush1.msra.mxu0 %v471
    %589 = vmatprep.subr.mxu0 0.0
    %590 = vmatpush1.msra.mxu0 %v470
    %591 = vmatprep.subr.mxu0 0.0
    %592 = vmatpush1.msra.mxu0 %v469
    %593 = vmatprep.subr.mxu0 0.0
    %594 = vmatpush1.msra.mxu0 %v468
    %595 = vmatprep.subr.mxu0 0.0
    %596 = vmatpush1.msra.mxu0 %v467
    %597 = vmatprep.subr.mxu0 0.0
    %598 = vmatpush1.msra.mxu0 %v466
    %599 = vmatprep.subr.mxu0 0.0
    %600 = vmatpush2.msra.mxu0 0.0
    %601 = vmatprep.subr.mxu0 0.0
    %602 = vmatpush2.msra.mxu0 0.0
    %603 = vmatprep.subr.mxu0 0.0
    %604 = vmatpush2.msra.mxu0 0.0
    %605 = vmatprep.subr.mxu0 0.0
    %606 = vmatpush2.msra.mxu0 0.0
    %607 = vmatprep.subr.mxu0 0.0
    %608 = vmatpush2.msra.mxu0 0.0
    %609 = vmatprep.subr.mxu0 0.0
    %610 = vmatpush2.msra.mxu0 0.0
    %611 = vmatprep.subr.mxu0 0.0
    %612 = vmatpush2.msra.mxu0 0.0
    %613 = vmatprep.subr.mxu0 0.0
    %614 = vmatpush2.msra.mxu0 0.0
    %615 = vmatprep.subr.mxu0 0.0
    %616 = vmatpush2.msra.mxu0 0.0
    %617 = vmatprep.subr.mxu0 0.0
    %618 = vmatpush2.msra.mxu0 0.0
    %619 = vmatprep.subr.mxu0 0.0
    %620 = vmatpush2.msra.mxu0 0.0
    %621 = vmatprep.subr.mxu0 0.0
    %622 = vmatpush2.msra.mxu0 0.0
    %623 = vmatprep.subr.mxu0 0.0
    %624 = vmatpush2.msra.mxu0 0.0
    %625 = vmatprep.subr.mxu0 0.0
    %626 = vmatpush2.msra.mxu0 0.0
    %627 = vmatprep.subr.mxu0 0.0
    %628 = vmatpush2.msra.mxu0 0.0
    %629 = vmatprep.subr.mxu0 0.0
    %630 = vmatpush2.msra.mxu0 0.0
    %631 = vmatprep.mubr.f32.mxu0 0.0
    %632 = vmatmul.mubr.f32.gmra.mxu0 %v430
    %v633 = vpop.f32.mrf.mxu0
    %v634 = vadd.f32 %v549, %v633
    %v635 = vpop.f32.mrf.mxu0
    %636 = vmatprep.mubr.f32.mxu0 0.0
    %637 = vmatmul.mubr.f32.gmra.mxu0 %v431
    %v638 = vpop.f32.mrf.mxu0
    %v639 = vadd.f32 %v554, %v638
    %v640 = vpop.f32.mrf.mxu0
    %641 = vmatprep.mubr.f32.mxu0 0.0
    %642 = vmatmul.mubr.f32.gmra.mxu0 %v432
    %v643 = vpop.f32.mrf.mxu0
    %v644 = vadd.f32 %v559, %v643
    %v645 = vpop.f32.mrf.mxu0
    %646 = vmatprep.mubr.f32.mxu0 0.0
    %647 = vmatmul.mubr.f32.gmra.mxu0 %v433
    %v648 = vpop.f32.mrf.mxu0
    %v649 = vadd.f32 %v564, %v648
    %v650 = vpop.f32.mrf.mxu0
    %651 = vdwg.mxu0
    %v652 = vrot.slane %v634, 7
    %v653 = vrot.slane %v639, 7
    %v654 = vrot.slane %v644, 7
    %v655 = vrot.slane %v649, 7
    %v656 = vsel %vm166, %v654, %v655
    %v657 = vsel %vm166, %v653, %v654
    %v658 = vsel %vm166, %v652, %v653
    %v659 = vsel %vm166, %v655, %v652
    %v660 = vsel %vm142, %v659, 0.0
    %v661 = vsel %vm143, %v658, 0.0
    %v662 = vsel %vm144, %v657, 0.0
    %v663 = vsel %vm145, %v656, 0.0
    %v664 = vrot.slane %v634, 1
    %v665 = vrot.slane %v639, 1
    %v666 = vrot.slane %v644, 1
    %v667 = vrot.slane %v649, 1
    %v668 = vsel %vm179, %v666, %v667
    %v669 = vsel %vm179, %v665, %v666
    %v670 = vsel %vm179, %v664, %v665
    %v671 = vsel %vm179, %v667, %v664
    %v672 = vsel %vm158, %v670, 0.0
    %v673 = vsel %vm159, %v669, 0.0
    %v674 = vsel %vm160, %v668, 0.0
    %v675 = vsel %vm161, %v671, 0.0
    %v676 = vld [vmem:[#allocation8] sm:$0xff]
    %v677 = vld [vmem:[#allocation8 + $0x8] sm:$0xff]
    %v678 = vld [vmem:[#allocation8 + $0x10] sm:$0xff]
    %v679 = vld [vmem:[#allocation8 + $0x18] sm:$0xff]
    %v680 = vld [vmem:[#allocation8 + $0x20] sm:$0xff]
    %v681 = vld [vmem:[#allocation8 + $0x28] sm:$0xff]
    %v682 = vld [vmem:[#allocation8 + $0x30] sm:$0xff]
    %v683 = vld [vmem:[#allocation8 + $0x38] sm:$0xff]
    %v684 = vld [vmem:[#allocation8 + $0x40] sm:$0xff]
    %v685 = vld [vmem:[#allocation8 + $0x48] sm:$0xff]
    %v686 = vld [vmem:[#allocation8 + $0x50] sm:$0xff]
    %v687 = vld [vmem:[#allocation8 + $0x58] sm:$0xff]
    %v688 = vld [vmem:[#allocation8 + $0x60] sm:$0xff]
    %v689 = vld [vmem:[#allocation8 + $0x68] sm:$0xff]
    %v690 = vld [vmem:[#allocation8 + $0x70] sm:$0xff]
    %v691 = vld [vmem:[#allocation8 + $0x78] sm:$0xff]
    %v692 = vld [vmem:[#allocation8 + $0x80] sm:$0xff]
    %v693 = vld [vmem:[#allocation8 + $0x88] sm:$0xff]
    %v694 = vld [vmem:[#allocation8 + $0x90] sm:$0xff]
    %v695 = vld [vmem:[#allocation8 + $0x98] sm:$0xff]
    %v696 = vld [vmem:[#allocation8 + $0xa0] sm:$0xff]
    %v697 = vld [vmem:[#allocation8 + $0xa8] sm:$0xff]
    %v698 = vld [vmem:[#allocation8 + $0xb0] sm:$0xff]
    %v699 = vld [vmem:[#allocation8 + $0xb8] sm:$0xff]
    %v700 = vld [vmem:[#allocation8 + $0xc0] sm:$0xff]
    %v701 = vld [vmem:[#allocation8 + $0xc8] sm:$0xff]
    %v702 = vld [vmem:[#allocation8 + $0xd0] sm:$0xff]
    %v703 = vld [vmem:[#allocation8 + $0xd8] sm:$0xff]
    %v704 = vld [vmem:[#allocation8 + $0xe0] sm:$0xff]
    %v705 = vld [vmem:[#allocation8 + $0xe8] sm:$0xff]
    %v706 = vld [vmem:[#allocation8 + $0xf0] sm:$0xff]
    %v707 = vld [vmem:[#allocation8 + $0xf8] sm:$0xff]
    %v708 = vld [vmem:[#allocation8 + $0x100] sm:$0xff]
    %v709 = vld [vmem:[#allocation8 + $0x108] sm:$0xff]
    %v710 = vld [vmem:[#allocation8 + $0x110] sm:$0xff]
    %v711 = vld [vmem:[#allocation8 + $0x118] sm:$0xff]
    %v712 = vld [vmem:[#allocation8 + $0x120] sm:$0xff]
    %v713 = vld [vmem:[#allocation8 + $0x128] sm:$0xff]
    %v714 = vld [vmem:[#allocation8 + $0x130] sm:$0xff]
    %v715 = vld [vmem:[#allocation8 + $0x138] sm:$0xff]
    %v716 = vld [vmem:[#allocation8 + $0x140] sm:$0xff]
    %v717 = vld [vmem:[#allocation8 + $0x148] sm:$0xff]
    %v718 = vld [vmem:[#allocation8 + $0x150] sm:$0xff]
    %v719 = vld [vmem:[#allocation8 + $0x158] sm:$0xff]
    %v720 = vld [vmem:[#allocation8 + $0x160] sm:$0xff]
    %v721 = vld [vmem:[#allocation8 + $0x168] sm:$0xff]
    %v722 = vld [vmem:[#allocation8 + $0x170] sm:$0xff]
    %v723 = vld [vmem:[#allocation8 + $0x178] sm:$0xff]
    %724 = vmatprep.subr.mxu0 0.0
    %725 = vmatpush1.msra.mxu0 %v691
    %726 = vmatprep.subr.mxu0 0.0
    %727 = vmatpush1.msra.mxu0 %v690
    %728 = vmatprep.subr.mxu0 0.0
    %729 = vmatpush1.msra.mxu0 %v689
    %730 = vmatprep.subr.mxu0 0.0
    %731 = vmatpush1.msra.mxu0 %v688
    %732 = vmatprep.subr.mxu0 0.0
    %733 = vmatpush1.msra.mxu0 %v687
    %734 = vmatprep.subr.mxu0 0.0
    %735 = vmatpush1.msra.mxu0 %v686
    %736 = vmatprep.subr.mxu0 0.0
    %737 = vmatpush1.msra.mxu0 %v685
    %738 = vmatprep.subr.mxu0 0.0
    %739 = vmatpush1.msra.mxu0 %v684
    %740 = vmatprep.subr.mxu0 0.0
    %741 = vmatpush1.msra.mxu0 %v683
    %742 = vmatprep.subr.mxu0 0.0
    %743 = vmatpush1.msra.mxu0 %v682
    %744 = vmatprep.subr.mxu0 0.0
    %745 = vmatpush1.msra.mxu0 %v681
    %746 = vmatprep.subr.mxu0 0.0
    %747 = vmatpush1.msra.mxu0 %v680
    %748 = vmatprep.subr.mxu0 0.0
    %749 = vmatpush1.msra.mxu0 %v679
    %750 = vmatprep.subr.mxu0 0.0
    %751 = vmatpush1.msra.mxu0 %v678
    %752 = vmatprep.subr.mxu0 0.0
    %753 = vmatpush1.msra.mxu0 %v677
    %754 = vmatprep.subr.mxu0 0.0
    %755 = vmatpush1.msra.mxu0 %v676
    %756 = vmatprep.subr.mxu0 0.0
    %757 = vmatpush2.msra.mxu0 %v707
    %758 = vmatprep.subr.mxu0 0.0
    %759 = vmatpush2.msra.mxu0 %v706
    %760 = vmatprep.subr.mxu0 0.0
    %761 = vmatpush2.msra.mxu0 %v705
    %762 = vmatprep.subr.mxu0 0.0
    %763 = vmatpush2.msra.mxu0 %v704
    %764 = vmatprep.subr.mxu0 0.0
    %765 = vmatpush2.msra.mxu0 %v703
    %766 = vmatprep.subr.mxu0 0.0
    %767 = vmatpush2.msra.mxu0 %v702
    %768 = vmatprep.subr.mxu0 0.0
    %769 = vmatpush2.msra.mxu0 %v701
    %770 = vmatprep.subr.mxu0 0.0
    %771 = vmatpush2.msra.mxu0 %v700
    %772 = vmatprep.subr.mxu0 0.0
    %773 = vmatpush2.msra.mxu0 %v699
    %774 = vmatprep.subr.mxu0 0.0
    %775 = vmatpush2.msra.mxu0 %v698
    %776 = vmatprep.subr.mxu0 0.0
    %777 = vmatpush2.msra.mxu0 %v697
    %778 = vmatprep.subr.mxu0 0.0
    %779 = vmatpush2.msra.mxu0 %v696
    %780 = vmatprep.subr.mxu0 0.0
    %781 = vmatpush2.msra.mxu0 %v695
    %782 = vmatprep.subr.mxu0 0.0
    %783 = vmatpush2.msra.mxu0 %v694
    %784 = vmatprep.subr.mxu0 0.0
    %785 = vmatpush2.msra.mxu0 %v693
    %786 = vmatprep.subr.mxu0 0.0
    %787 = vmatpush2.msra.mxu0 %v692
    %788 = vmatprep.mubr.f32.mxu0 %v634
    %789 = vmatmul.mubr.f32.gmra.mxu0 %v660
    %v790 = vpop.f32.mrf.mxu0
    %v791 = vadd.f32 0.0, %v790
    %v792 = vpop.f32.mrf.mxu0
    %793 = vmatprep.mubr.f32.mxu0 %v639
    %794 = vmatmul.mubr.f32.gmra.mxu0 %v661
    %v795 = vpop.f32.mrf.mxu0
    %v796 = vadd.f32 0.0, %v795
    %v797 = vpop.f32.mrf.mxu0
    %798 = vmatprep.mubr.f32.mxu0 %v644
    %799 = vmatmul.mubr.f32.gmra.mxu0 %v662
    %v800 = vpop.f32.mrf.mxu0
    %v801 = vadd.f32 0.0, %v800
    %v802 = vpop.f32.mrf.mxu0
    %803 = vmatprep.mubr.f32.mxu0 %v649
    %804 = vmatmul.mubr.f32.gmra.mxu0 %v663
    %v805 = vpop.f32.mrf.mxu0
    %v806 = vadd.f32 0.0, %v805
    %v807 = vpop.f32.mrf.mxu0
    %808 = vdwg.mxu0
    %809 = vmatprep.subr.mxu0 0.0
    %810 = vmatpush1.msra.mxu0 %v723
    %811 = vmatprep.subr.mxu0 0.0
    %812 = vmatpush1.msra.mxu0 %v722
    %813 = vmatprep.subr.mxu0 0.0
    %814 = vmatpush1.msra.mxu0 %v721
    %815 = vmatprep.subr.mxu0 0.0
    %816 = vmatpush1.msra.mxu0 %v720
    %817 = vmatprep.subr.mxu0 0.0
    %818 = vmatpush1.msra.mxu0 %v719
    %819 = vmatprep.subr.mxu0 0.0
    %820 = vmatpush1.msra.mxu0 %v718
    %821 = vmatprep.subr.mxu0 0.0
    %822 = vmatpush1.msra.mxu0 %v717
    %823 = vmatprep.subr.mxu0 0.0
    %824 = vmatpush1.msra.mxu0 %v716
    %825 = vmatprep.subr.mxu0 0.0
    %826 = vmatpush1.msra.mxu0 %v715
    %827 = vmatprep.subr.mxu0 0.0
    %828 = vmatpush1.msra.mxu0 %v714
    %829 = vmatprep.subr.mxu0 0.0
    %830 = vmatpush1.msra.mxu0 %v713
    %831 = vmatprep.subr.mxu0 0.0
    %832 = vmatpush1.msra.mxu0 %v712
    %833 = vmatprep.subr.mxu0 0.0
    %834 = vmatpush1.msra.mxu0 %v711
    %835 = vmatprep.subr.mxu0 0.0
    %836 = vmatpush1.msra.mxu0 %v710
    %837 = vmatprep.subr.mxu0 0.0
    %838 = vmatpush1.msra.mxu0 %v709
    %839 = vmatprep.subr.mxu0 0.0
    %840 = vmatpush1.msra.mxu0 %v708
    %841 = vmatprep.subr.mxu0 0.0
    %842 = vmatpush2.msra.mxu0 0.0
    %843 = vmatprep.subr.mxu0 0.0
    %844 = vmatpush2.msra.mxu0 0.0
    %845 = vmatprep.subr.mxu0 0.0
    %846 = vmatpush2.msra.mxu0 0.0
    %847 = vmatprep.subr.mxu0 0.0
    %848 = vmatpush2.msra.mxu0 0.0
    %849 = vmatprep.subr.mxu0 0.0
    %850 = vmatpush2.msra.mxu0 0.0
    %851 = vmatprep.subr.mxu0 0.0
    %852 = vmatpush2.msra.mxu0 0.0
    %853 = vmatprep.subr.mxu0 0.0
    %854 = vmatpush2.msra.mxu0 0.0
    %855 = vmatprep.subr.mxu0 0.0
    %856 = vmatpush2.msra.mxu0 0.0
    %857 = vmatprep.subr.mxu0 0.0
    %858 = vmatpush2.msra.mxu0 0.0
    %859 = vmatprep.subr.mxu0 0.0
    %860 = vmatpush2.msra.mxu0 0.0
    %861 = vmatprep.subr.mxu0 0.0
    %862 = vmatpush2.msra.mxu0 0.0
    %863 = vmatprep.subr.mxu0 0.0
    %864 = vmatpush2.msra.mxu0 0.0
    %865 = vmatprep.subr.mxu0 0.0
    %866 = vmatpush2.msra.mxu0 0.0
    %867 = vmatprep.subr.mxu0 0.0
    %868 = vmatpush2.msra.mxu0 0.0
    %869 = vmatprep.subr.mxu0 0.0
    %870 = vmatpush2.msra.mxu0 0.0
    %871 = vmatprep.subr.mxu0 0.0
    %872 = vmatpush2.msra.mxu0 0.0
    %873 = vmatprep.mubr.f32.mxu0 0.0
    %874 = vmatmul.mubr.f32.gmra.mxu0 %v672
    %v875 = vpop.f32.mrf.mxu0
    %v876 = vadd.f32 %v791, %v875
    %v877 = vpop.f32.mrf.mxu0
    %878 = vmatprep.mubr.f32.mxu0 0.0
    %879 = vmatmul.mubr.f32.gmra.mxu0 %v673
    %v880 = vpop.f32.mrf.mxu0
    %v881 = vadd.f32 %v796, %v880
    %v882 = vpop.f32.mrf.mxu0
    %883 = vmatprep.mubr.f32.mxu0 0.0
    %884 = vmatmul.mubr.f32.gmra.mxu0 %v674
    %v885 = vpop.f32.mrf.mxu0
    %v886 = vadd.f32 %v801, %v885
    %v887 = vpop.f32.mrf.mxu0
    %888 = vmatprep.mubr.f32.mxu0 0.0
    %889 = vmatmul.mubr.f32.gmra.mxu0 %v675
    %v890 = vpop.f32.mrf.mxu0
    %v891 = vadd.f32 %v806, %v890
    %v892 = vpop.f32.mrf.mxu0
    %893 = vdwg.mxu0
    %894 = vst [vmem:[#allocation10] sm:$0xff] %v876
    %895 = vst [vmem:[#allocation10 + $0x8] sm:$0xff] %v881
    %896 = vst [vmem:[#allocation10 + $0x10] sm:$0xff] %v886
    %897 = vst [vmem:[#allocation10 + $0x18] sm:$0xff] %v891
    // Predicated region
    $region34: #{tpu_custom_call.1} parent=1 // pred_check
      _
    $region35: #{tpu_custom_call.1} parent=1 // pred_check_branch
      %899 = sbr.rel (0) target = $region37
    $region36: #{tpu_custom_call.1} parent=1 // pred_region
      %s901 = ssub.s32 512, 512
      %902 = vsyncadd [#allocation4], %s901
      %s903 = sshll.u32 [#allocation10], 4
      %s904 = int_to_ptr.vmem [resolvable:$true] %s903
      %909 = dma.vmem_to_hbm [thread:$0]  %s904, 512, %s4, [#allocation4], 128, 128, 8
    $region37: #{tpu_custom_call.1} parent=1 // pred_fallthru
      _
    // Predicated region
    $region38: #{tpu_custom_call.1} parent=1 // pred_check
      _
    $region39: #{tpu_custom_call.1} parent=1 // pred_check_branch
      %911 = sbr.rel (0) target = $region41
    $region40: #{tpu_custom_call.1} parent=1 // pred_region
      %912 = dma.done [#allocation4], 512
    $region41: #{tpu_custom_call.1} parent=1 // pred_fallthru
      _
    %913 = vsyncpa [#allocation3], 1
    %914 = vsyncpa [#allocation6], 1
    %915 = vsyncpa [#allocation9], 1
    %916 = vsyncpa [#allocation4], 1

</llo_original>
